<compile_context>
chip_gen: v6e
topology: v6e:2x2x1
jax: 0.10.0
libtpu: 0.0.40
codegen_flags: <defaults>
</compile_context>

<pallas_src>
import functools

import jax
import jax.numpy as jnp
from jax.experimental import pallas as pl
from jax.experimental.pallas import tpu as pltpu


_LANE = 128                       # TPU lane width
_ROW_TILE = 32                    # uint8 sublane packing tile
_LANE_CAP = 16384                 # max lanes per block
_TARGET_BLOCK_BYTES = 2 << 20     # ~2 MiB uint8 pixel blocks
_RESIDENT_SCALE_MAX_ROWS = 4096   # keep resident scale column small in VMEM


def _cdiv(a, b):
    return -(-a // b)


def _round_up(x, m):
    return (x + m - 1) // m * m


def _jitter_kernel(s_ref, x_ref, o_ref, *, rows_per_block=None):
    """One (rows, lanes) uint8 pixel block.

    s_ref : VMEM f32 scale column; either exactly the (rb, 1) block for this
            grid row (rows_per_block is None) or the full resident (NC_pad, 1)
            column that we slice dynamically by grid row.
    x_ref : VMEM uint8 (rb, lanes) input pixels.
    o_ref : VMEM uint8 (rb, lanes) output pixels (clip + truncate to uint8 grid).
    """
    if rows_per_block is None:
        s = s_ref[...]                                        # (rb, 1)
    else:
        start = pl.program_id(0) * rows_per_block
        if rows_per_block % 8 == 0:
            start = pl.multiple_of(start, 8)
        s = s_ref[pl.ds(start, rows_per_block), :]            # (rb, 1)

    # uint8 -> f32 via int32 (robust Mosaic lowering); the multiply stays in
    # f32 so the truncated result matches numpy's float32 pipeline.
    x = x_ref[...].astype(jnp.int32).astype(jnp.float32)      # (rb, lanes)
    y = jnp.clip(x * s, 0.0, 255.0)
    # float -> int truncation == floor for non-negative values, matching
    # numpy's .astype(np.uint8) after the clip.
    o_ref[...] = y.astype(jnp.int32).astype(jnp.uint8)


def _pick_tiles(nc, hw_pad, *, target_bytes=_TARGET_BLOCK_BYTES):
    """(rows_per_block, lanes_per_block) for a uint8 (nc, hw_pad) slab."""
    lane_chunk = hw_pad if hw_pad <= _LANE_CAP else _LANE_CAP

    rows = max(_ROW_TILE, (target_bytes // lane_chunk) // _ROW_TILE * _ROW_TILE)
    if rows >= nc:
        rows = nc                                   # full-extent block is always legal
        # few channel-planes: widen the lane chunk back toward the target size
        if lane_chunk < hw_pad and rows * lane_chunk < target_bytes:
            lane_chunk = min(hw_pad,
                             max(_LANE, (target_bytes // max(rows, 1)) // _LANE * _LANE))

    # v7x megacore: make sure both TensorCores get work when data is non-trivial.
    def n_steps(r):
        return _cdiv(nc, r) * _cdiv(hw_pad, lane_chunk)

    if nc * hw_pad >= (4 << 20):
        while rows > _ROW_TILE and n_steps(rows) < 8:
            new_rows = max(_ROW_TILE, (rows // 2) // _ROW_TILE * _ROW_TILE)
            if new_rows == rows:
                break
            rows = new_rows

    return rows, lane_chunk


def random_color_jitter(images, scales, *, target_block_bytes=_TARGET_BLOCK_BYTES):
    """Batched RandomColorJitter forward.

    images: (N, C, H, W) uint8 pixel planes (0..255).
    scales: (N, C) float32 per-sample per-channel factors (1 + uniform(-p, p);
            exactly 1.0 for channels whose jitter strength is 0).
    Returns (N, C, H, W) uint8 == uint8(clip(float32(images) * scale, 0, 255)).
    """
    assert images.dtype == jnp.uint8, "expects uint8 image planes (PIL semantics)"
    N, C, H, W = images.shape
    NC, HW = N * C, H * W

    # Lane-dense slab; pad the pixel axis to a multiple of 128 so stores are
    # unmasked vst (no-op for common sizes).
    HW_pad = _round_up(HW, _LANE)
    x = images.reshape(NC, HW)
    if HW_pad != HW:
        x = jnp.pad(x, ((0, 0), (0, HW_pad - HW)))

    rb, lane_chunk = _pick_tiles(NC, HW_pad, target_bytes=target_block_bytes)
    grid = (_cdiv(NC, rb), _cdiv(HW_pad, lane_chunk))
    NC_pad = grid[0] * rb

    s = scales.reshape(NC, 1).astype(jnp.float32)
    if NC_pad != NC:
        s = jnp.pad(s, ((0, NC_pad - NC), (0, 0)), constant_values=1.0)

    # Keep the tiny scale column resident in VMEM (one DMA total) unless the
    # batch is huge, in which case fall back to a per-block (rb, 1) sliver.
    resident = NC_pad <= _RESIDENT_SCALE_MAX_ROWS
    if resident:
        s_spec = pl.BlockSpec((NC_pad, 1), lambda i, j: (0, 0))
        rows_arg = rb if grid[0] > 1 else None
    else:
        s_spec = pl.BlockSpec((rb, 1), lambda i, j: (i, 0))
        rows_arg = None

    out = pl.pallas_call(
        functools.partial(_jitter_kernel, rows_per_block=rows_arg),
        out_shape=jax.ShapeDtypeStruct((NC, HW_pad), jnp.uint8),
        grid=grid,
        in_specs=[
            s_spec,                                           # scales (resident or per-block)
            pl.BlockSpec((rb, lane_chunk), lambda i, j: (i, j)),   # pixels
        ],
        out_specs=pl.BlockSpec((rb, lane_chunk), lambda i, j: (i, j)),
        compiler_params=pltpu.CompilerParams(
            dimension_semantics=("parallel", "parallel"),     # independent blocks -> megacore
            vmem_limit_bytes=32 << 20,                        # headroom vs v5e's 16 MiB default
        ),
    )(s, x)

    if HW_pad != HW:
        out = out[:, :HW]
    return out.reshape(N, C, H, W)


def make_jitter_scales(key, n, rgb):
    """Reproduces `prob = 1 + random.uniform(-p, p)` per channel, per sample.

    Channels with p == 0 get an exact scale of 1.0 (pass-through, matching the
    `if self.x != 0` branches in the original module)."""
    p = jnp.asarray(rgb, jnp.float32)                               # (3,)
    u = jax.random.uniform(key, (n, p.shape[0]), minval=-1.0, maxval=1.0)
    scales = 1.0 + u * p[None, :]
    return jnp.where(p[None, :] == 0.0, 1.0, scales)                # (N, 3)


if __name__ == "__main__":
    key = jax.random.PRNGKey(0)
    k_img, k_jit, k_img2, k_img3 = jax.random.split(key, 4)

    def ref_forward(imgs, sc):
        y = imgs.astype(jnp.float32) * sc[:, :, None, None]
        return jnp.clip(y, 0.0, 255.0).astype(jnp.uint8)

    # 1) small RGB batch, pixel axis already lane-aligned (16*16 = 256)
    N, C, H, W = 2, 3, 16, 16
    images = jax.random.randint(k_img, (N, C, H, W), 0, 256, dtype=jnp.int32).astype(jnp.uint8)
    scales = make_jitter_scales(k_jit, N, (0.4, 0.0, 0.2))          # g == 0 -> pass-through
    out = jax.block_until_ready(random_color_jitter(images, scales))
    assert out.shape == images.shape and out.dtype == jnp.uint8
    assert jnp.array_equal(out, ref_forward(images, scales))
    assert jnp.array_equal(out[:, 1], images[:, 1])                 # p == 0 channel untouched

    # 2) odd spatial size -> exercises the lane-padding path (10*13 = 130 -> 256)
    images2 = jax.random.randint(k_img2, (2, 3, 10, 13), 0, 256, dtype=jnp.int32).astype(jnp.uint8)
    scales2 = make_jitter_scales(k_jit, 2, (0.3, 0.5, 0.0))
    out2 = jax.block_until_ready(random_color_jitter(images2, scales2))
    assert jnp.array_equal(out2, ref_forward(images2, scales2))
    assert jnp.array_equal(out2[:, 2], images2[:, 2])

    # 3) larger batch with a tiny block budget -> exercises the multi-row-block
    #    grid, the resident-scale dynamic slice and a partial last row block
    images3 = jax.random.randint(k_img3, (16, 3, 32, 32), 0, 256, dtype=jnp.int32).astype(jnp.uint8)
    scales3 = make_jitter_scales(k_jit, 16, (0.2, 0.1, 0.4))
    out3 = jax.block_until_ready(
        random_color_jitter(images3, scales3, target_block_bytes=8 << 10))
    assert jnp.array_equal(out3, ref_forward(images3, scales3))

    print("KERNEL_OK")
</pallas_src>

<mosaic_0001>
module attributes {stable_mosaic.version = 11 : i64} {
  func.func @_jitter_kernel(%arg0: i32, %arg1: i32, %arg2: memref<6x1xf32, #tpu.memory_space<vmem>>, %arg3: memref<6x256xi8, #tpu.memory_space<vmem>>, %arg4: memref<6x256xi8, #tpu.memory_space<vmem>>) attributes {dimension_semantics = [#tpu.dimension_semantics<parallel>, #tpu.dimension_semantics<parallel>], iteration_bounds = array<i64: 1, 1>, scalar_prefetch = 0 : i64, scratch_operands = 0 : i64, tpu.core_type = #tpu.core_type<tc>, window_params = [{pipeline_mode = #tpu.pipeline_mode<synchronous>, transform_indices = @transform_0, window_bounds = array<i64: 6, 1>}, {transform_indices = @transform_1, window_bounds = array<i64: 6, 256>}, {transform_indices = @transform_2, window_bounds = array<i64: 6, 256>}]} {
    %c0 = arith.constant 0 : index
    %c0_0 = arith.constant 0 : index
    %0 = vector.load %arg2[%c0, %c0_0] : memref<6x1xf32, #tpu.memory_space<vmem>>, vector<6x1xf32>
    %c0_1 = arith.constant 0 : index
    %c0_2 = arith.constant 0 : index
    %1 = vector.load %arg3[%c0_1, %c0_2] : memref<6x256xi8, #tpu.memory_space<vmem>>, vector<6x256xi8>
    %2 = arith.extui %1 : vector<6x256xi8> to vector<6x256xi32>
    %3 = arith.sitofp %2 : vector<6x256xi32> to vector<6x256xf32>
    %4 = vector.broadcast %0 : vector<6x1xf32> to vector<6x256xf32>
    %5 = arith.mulf %3, %4 : vector<6x256xf32>
    %cst = arith.constant 0.000000e+00 : f32
    %cst_3 = arith.constant 2.550000e+02 : f32
    %6 = vector.broadcast %cst : f32 to vector<6x256xf32>
    %7 = arith.maximumf %6, %5 : vector<6x256xf32>
    %8 = vector.broadcast %cst_3 : f32 to vector<6x256xf32>
    %9 = arith.minimumf %8, %7 : vector<6x256xf32>
    %10 = arith.fptosi %9 : vector<6x256xf32> to vector<6x256xi32>
    %11 = arith.trunci %10 : vector<6x256xi32> to vector<6x256xi8>
    %c0_4 = arith.constant 0 : index
    %c0_5 = arith.constant 0 : index
    %12 = vector.load %arg4[%c0_4, %c0_5] : memref<6x256xi8, #tpu.memory_space<vmem>>, vector<6x256xi8>
    tpu.vector_store %arg4[%c0_4, %c0_5], %11 {strides = array<i32>} : memref<6x256xi8, #tpu.memory_space<vmem>>, vector<6x256xi8>,
    return
  }
  func.func @transform_0(%arg0: i32, %arg1: i32) -> (i32, i32) {
    %c0_i32 = arith.constant 0 : i32
    %c0_i32_0 = arith.constant 0 : i32
    %c0_i32_1 = arith.constant 0 : i32
    return %c0_i32, %c0_i32_0 : i32, i32
  }
  func.func @transform_1(%arg0: i32, %arg1: i32) -> (i32, i32) {
    %c0_i32 = arith.constant 0 : i32
    return %arg0, %arg1 : i32, i32
  }
  func.func @transform_2(%arg0: i32, %arg1: i32) -> (i32, i32) {
    %c0_i32 = arith.constant 0 : i32
    return %arg0, %arg1 : i32, i32
  }
}

</mosaic_0001>

<llo_original>
// kernel: tpu_custom_call.1
$region0: #{tpu_custom_call.1}
  #allocation0 [shape = 'u32[]', space=smem, size = 0x4, offset = 0x4, fixed_abs, tag = 'smem constant byte address 0x4 - core index']
  #allocation1 [shape = 'u32[144,128]{1,0:T(1,128)}', space=vmem, size = 0x12000, scoped, tag = 'internal scratch']
  %s0 = inlined_call_operand.vmem [shape: f32[6,1], index: 0, kind: input, shape index: {}]
  %s1 = inlined_call_operand.vmem [shape: u8[6,256], index: 1, kind: input, shape index: {}]
  %s2 = inlined_call_operand.hbm [shape: u8[6,256], index: 2, kind: output, shape index: {}]
  %s3 = sld [smem:[#allocation0]]
  $region18: #{tpu_custom_call.1} parent=0
    _
  %s5 = ssub.s32 1, %s3
  %s6 = scalar_select 0, %s5, %s3
  $region1: #{tpu_custom_call.1} parent=0
    #allocation2 [shape = 'u8[2048]{0}', space=vmem, size = 0x800, scoped, tag = 'output window, operand 0, single buffered']
    #allocation3 [shape = 's32[1]{0}', space=sflag, size = 0x4, scoped, tag = 'scoped memory for tpu_custom_call.1']
    %7 = vsyncpa [#allocation3], 0
    // Predicated region
    $region2: #{tpu_custom_call.1} parent=1 // pred_check
      _
    $region3: #{tpu_custom_call.1} parent=1 // pred_check_branch
      %9 = sbr.rel (0) target = $region5
    $region4: #{tpu_custom_call.1} parent=1 // pred_region
      _
    $region5: #{tpu_custom_call.1} parent=1 // pred_fallthru
      _
    // Predicated region
    $region6: #{tpu_custom_call.1} parent=1 // pred_check
      _
    $region7: #{tpu_custom_call.1} parent=1 // pred_check_branch
      %11 = sbr.rel (0) target = $region9
    $region8: #{tpu_custom_call.1} parent=1 // pred_region
      _
    $region9: #{tpu_custom_call.1} parent=1 // pred_fallthru
      _
    %v12 = vld [vmem:[%s0] sm:$0x3f]
    %v13 = vld [vmem:[%s1] sm:$0xf]
    %v14 = vunpack.c.0.s8 %v13
    %v15 = vunpack.c.1.s8 %v13
    %v16 = vand.u32 %v14, 255
    %v17 = vand.u32 %v15, 255
    %v18 = vcvt.s32.f32 %v16
    %v19 = vcvt.s32.f32 %v17
    %21 = vset.pattern.permute.xlu0 0
    %22 = vperm.xlu0 %21, %v12
    %v23 = vpop.permute.xlu0 %22
    %v25 = vmul.f32 %v18, %v23
    %v26 = vmul.f32 %v19, %v23
    %v27 = vmax.f32 %v25, 0.0
    %v28 = vmax.f32 %v26, 0.0
    %v29 = vmin.f32 %v27, 255.0
    %v30 = vmin.f32 %v28, 255.0
    %v31 = vcvt.f32.s32.to.zero.pseudo %v29
    %v32 = vcvt.f32.s32.to.zero.pseudo %v30
    %v33 = vpack.c.b16 %v32, %v31
    %v34 = vpack.c.b8 %v33, %v33
    %vm35 = vcmask 1041408
    %vm36 = vsmask.f32 1280
    %vm37 = vmand %vm35, %vm36
    %vm38 = vcmask 1043458
    %vm39 = vsmask.f32 3328
    %vm40 = vmand %vm38, %vm39
    %vm41 = vmor %vm40, %vm37
    %v42 = vld [vmem:[#allocation2] sm:$0xf]
    %v43 = vsel %vm41, %v34, %v42
    %44 = vst [vmem:[#allocation2] sm:$0xf] %v43
    // Predicated region
    $region10: #{tpu_custom_call.1} parent=1 // pred_check
      _
    $region11: #{tpu_custom_call.1} parent=1 // pred_check_branch
      %46 = sbr.rel (0) target = $region13
    $region12: #{tpu_custom_call.1} parent=1 // pred_region
      %s48 = ssub.s32 64, 64
      %49 = vsyncadd [#allocation3], %s48
      %s51 = sshll.u32 [#allocation2], 4
      %s52 = int_to_ptr.vmem [resolvable:$true] %s51
      %54 = dma.vmem_to_hbm [thread:$0]  %s52, 64, %s2, [#allocation3]
    $region13: #{tpu_custom_call.1} parent=1 // pred_fallthru
      _
    // Predicated region
    $region14: #{tpu_custom_call.1} parent=1 // pred_check
      _
    $region15: #{tpu_custom_call.1} parent=1 // pred_check_branch
      %56 = sbr.rel (0) target = $region17
    $region16: #{tpu_custom_call.1} parent=1 // pred_region
      %57 = dma.done [#allocation3], 64
    $region17: #{tpu_custom_call.1} parent=1 // pred_fallthru
      _
    %58 = vsyncpa [#allocation3], 1

</llo_original>
